<compile_context>
chip_gen: v5e
topology: v5e:2x2
jax: 0.10.0
libtpu: 0.0.40
codegen_flags: <defaults>
</compile_context>

<pallas_src>
import functools

import jax
import jax.numpy as jnp
from jax.experimental import pallas as pl
from jax.experimental.pallas import tpu as pltpu


def _search_kernel(k, q_ref, w_ref, lab_ref,
                   scores_ref, idx_ref, seqs_ref, labels_ref):
    """One batch tile: normalize, similarity matmul, iterative top-k, gathers.

    q_ref:      (tB, D)   queries tile
    w_ref:      (N, D)    L2-normalized database rows (== self.weight.T)
    lab_ref:    (1, N)    per-row labels
    scores_ref: (tB, k)   top-k cosine scores (descending)
    idx_ref:    (tB, k)   top-k row indices (int32)
    seqs_ref:   (tB, k*D) gathered database rows, lane-dense slab
    labels_ref: (tB, k)   gathered labels
    """
    tB, D = q_ref.shape
    N = w_ref.shape[0]

    q = q_ref[...].astype(jnp.float32)
    w = w_ref[...].astype(jnp.float32)
    lab_b = jnp.broadcast_to(lab_ref[...].astype(jnp.float32), (tB, N))  # hoisted

    # L2-normalize queries (EUP rsqrt).
    qn = q * jax.lax.rsqrt(jnp.sum(q * q, axis=-1, keepdims=True))

    # similarities = qn @ w^T  -- contract over D, no transpose materialized.
    sims = jax.lax.dot_general(
        qn, w,
        dimension_numbers=(((1,), (1,)), ((), ())),
        preferred_element_type=jnp.float32)                    # (tB, N)

    col = jax.lax.broadcasted_iota(jnp.int32, (tB, N), 1)

    work = sims
    sc_cols, ix_cols, lb_cols = [], [], []
    for j in range(k):
        m = jnp.max(work, axis=-1, keepdims=True)              # (tB, 1)
        idx = jnp.min(jnp.where(work == m, col, N),            # lowest index on ties
                      axis=-1, keepdims=True)                  # (tB, 1) int32
        hit = col == idx                                        # (tB, N) exactly-one

        sc_cols.append(m)
        ix_cols.append(idx)
        lb_cols.append(jnp.sum(jnp.where(hit, lab_b, 0.0),
                               axis=-1, keepdims=True))

        # Row gather of the selected database vectors via one-hot MXU matmul.
        onehot = hit.astype(jnp.float32)                        # (tB, N)
        seq_j = jnp.dot(onehot, w, preferred_element_type=jnp.float32)  # (tB, D)
        seqs_ref[:, j * D:(j + 1) * D] = seq_j.astype(seqs_ref.dtype)

        # Knock out the selected lane and go again.
        work = jnp.where(hit, -jnp.inf, work)

    scores_ref[...] = jnp.concatenate(sc_cols, axis=-1).astype(scores_ref.dtype)
    idx_ref[...] = jnp.concatenate(ix_cols, axis=-1).astype(jnp.int32)
    labels_ref[...] = jnp.concatenate(lb_cols, axis=-1).astype(labels_ref.dtype)


def search_layer_init(initial_weight):
    """Equivalent of SearchLayer.__init__ (one-time, outside the kernel)."""
    w_rows = initial_weight[:, :-1]
    w_rows = w_rows / jnp.linalg.norm(w_rows, axis=-1, keepdims=True)  # (N, D)
    labels = initial_weight[:, -1]                                      # (N,)
    return w_rows, labels


def search_layer_forward(queries, weight_rows, labels, *, k=3, block_b=8):
    """SearchLayer.forward: returns (top_k_scores, top_k_indices, top_k_seqs,
    top_k_labels) with the same shapes/semantics as the PyTorch module."""
    B, D = queries.shape
    N, _ = weight_rows.shape
    assert B % block_b == 0, "batch must be a multiple of the batch tile"

    kernel = functools.partial(_search_kernel, k)
    scores, idx, seqs, top_labels = pl.pallas_call(
        kernel,
        grid_spec=pltpu.PrefetchScalarGridSpec(
            num_scalar_prefetch=0,
            grid=(B // block_b,),
            in_specs=[
                pl.BlockSpec((block_b, D), lambda i: (i, 0)),   # queries tile
                pl.BlockSpec((N, D), lambda i: (0, 0)),         # database (resident)
                pl.BlockSpec((1, N), lambda i: (0, 0)),         # labels (resident)
            ],
            out_specs=[
                pl.BlockSpec((block_b, k), lambda i: (i, 0)),
                pl.BlockSpec((block_b, k), lambda i: (i, 0)),
                pl.BlockSpec((block_b, k * D), lambda i: (i, 0)),
                pl.BlockSpec((block_b, k), lambda i: (i, 0)),
            ],
        ),
        out_shape=(
            jax.ShapeDtypeStruct((B, k), jnp.float32),      # top_k_scores
            jax.ShapeDtypeStruct((B, k), jnp.int32),        # top_k_indices
            jax.ShapeDtypeStruct((B, k * D), jnp.float32),  # top_k_seqs (packed)
            jax.ShapeDtypeStruct((B, k), jnp.float32),      # top_k_labels
        ),
        compiler_params=pltpu.CompilerParams(
            dimension_semantics=("parallel",),
            vmem_limit_bytes=32 * 1024 * 1024,
        ),
    )(queries, weight_rows, labels.reshape(1, N))

    # (B, k*D) -> (B*k, D): matches weight.T[top_k_indices.flatten()] ordering.
    return scores, idx, seqs.reshape(B * k, D), top_labels


if __name__ == "__main__":
    # Small, lane-dense config: D and N multiples of 128.
    B, D, N, K = 16, 128, 256, 3

    key = jax.random.PRNGKey(0)
    k_vec, k_lab, k_q = jax.random.split(key, 3)
    vectors = jax.random.normal(k_vec, (N, D), jnp.float32)
    label_col = jax.random.randint(k_lab, (N, 1), 0, 10).astype(jnp.float32)
    initial_weight = jnp.concatenate([vectors, label_col], axis=1)  # (N, D+1)
    queries = jax.random.normal(k_q, (B, D), jnp.float32)

    w_rows, labels = search_layer_init(initial_weight)
    scores, idx, seqs, top_labels = search_layer_forward(
        queries, w_rows, labels, k=K)
    jax.block_until_ready((scores, idx, seqs, top_labels))

    # Shape / sanity checks.
    assert scores.shape == (B, K), scores.shape
    assert idx.shape == (B, K), idx.shape
    assert seqs.shape == (B * K, D), seqs.shape
    assert top_labels.shape == (B, K), top_labels.shape
    assert bool(jnp.all(jnp.isfinite(scores)))
    assert bool(jnp.all((idx >= 0) & (idx < N)))
    assert bool(jnp.all(scores[:, :-1] >= scores[:, 1:] - 1e-6))  # descending

    # Pure-JAX reference for the score values.
    qn_ref = queries / jnp.linalg.norm(queries, axis=-1, keepdims=True)
    sims_ref = qn_ref @ w_rows.T
    ref_scores, _ = jax.lax.top_k(sims_ref, K)
    assert bool(jnp.allclose(scores, ref_scores, atol=1e-2, rtol=1e-2))

    # Gathered outputs must be consistent with the kernel's own indices.
    assert bool(jnp.allclose(top_labels, labels[idx], atol=1e-6))
    assert bool(jnp.allclose(seqs, w_rows[idx.reshape(-1)], atol=1e-5, rtol=1e-5))

    print("KERNEL_OK")
</pallas_src>

<mosaic_0001>
module attributes {stable_mosaic.version = 11 : i64} {
  func.func @_search_kernel(%arg0: i32, %arg1: memref<8x128xf32, #tpu.memory_space<vmem>>, %arg2: memref<256x128xf32, #tpu.memory_space<vmem>>, %arg3: memref<1x256xf32, #tpu.memory_space<vmem>>, %arg4: memref<8x3xf32, #tpu.memory_space<vmem>>, %arg5: memref<8x3xi32, #tpu.memory_space<vmem>>, %arg6: memref<8x384xf32, #tpu.memory_space<vmem>>, %arg7: memref<8x3xf32, #tpu.memory_space<vmem>>) attributes {dimension_semantics = [#tpu.dimension_semantics<parallel>], iteration_bounds = array<i64: 2>, scalar_prefetch = 0 : i64, scratch_operands = 0 : i64, tpu.core_type = #tpu.core_type<tc>, window_params = [{transform_indices = @transform_0, window_bounds = array<i64: 8, 128>}, {pipeline_mode = #tpu.pipeline_mode<synchronous>, transform_indices = @transform_1, window_bounds = array<i64: 256, 128>}, {pipeline_mode = #tpu.pipeline_mode<synchronous>, transform_indices = @transform_2, window_bounds = array<i64: 1, 256>}, {transform_indices = @transform_3, window_bounds = array<i64: 8, 3>}, {transform_indices = @transform_4, window_bounds = array<i64: 8, 3>}, {transform_indices = @transform_5, window_bounds = array<i64: 8, 384>}, {transform_indices = @transform_6, window_bounds = array<i64: 8, 3>}]} {
    %c0 = arith.constant 0 : index
    %c0_0 = arith.constant 0 : index
    %0 = vector.load %arg1[%c0, %c0_0] : memref<8x128xf32, #tpu.memory_space<vmem>>, vector<8x128xf32>
    %c0_1 = arith.constant 0 : index
    %c0_2 = arith.constant 0 : index
    %1 = vector.load %arg2[%c0_1, %c0_2] : memref<256x128xf32, #tpu.memory_space<vmem>>, vector<256x128xf32>
    %c0_3 = arith.constant 0 : index
    %c0_4 = arith.constant 0 : index
    %2 = vector.load %arg3[%c0_3, %c0_4] : memref<1x256xf32, #tpu.memory_space<vmem>>, vector<1x256xf32>
    %3 = vector.shape_cast %2 : vector<1x256xf32> to vector<1x256xf32>
    %4 = vector.broadcast %3 : vector<1x256xf32> to vector<8x256xf32>
    %5 = arith.mulf %0, %0 : vector<8x128xf32>
    %cst = arith.constant dense<0.000000e+00> : vector<8xf32>
    %6 = vector.multi_reduction <add>, %5, %cst [1] : vector<8x128xf32> to vector<8xf32>
    %7 = vector.shape_cast %6 : vector<8xf32> to vector<8x1xf32>
    %8 = math.rsqrt %7 : vector<8x1xf32>
    %9 = vector.broadcast %8 : vector<8x1xf32> to vector<8x128xf32>
    %10 = arith.mulf %0, %9 : vector<8x128xf32>
    %cst_5 = arith.constant dense<0.000000e+00> : vector<8x256xf32>
    %11 = tpu.matmul %10, %1, %cst_5 {dimension_numbers = #tpu.dot_dimension_numbers<[1], [1], [0], [0], [0, 0, 1, 0], [], []>} : vector<8x128xf32>, vector<256x128xf32>, vector<8x256xf32> -> vector<8x256xf32>
    %12 = tpu.iota {dimensions = array<i32: 1>} : vector<8x256xi32>
    %cst_6 = arith.constant dense<0xFF800000> : vector<8xf32>
    %13 = vector.multi_reduction <maximumf>, %11, %cst_6 [1] : vector<8x256xf32> to vector<8xf32>
    %14 = vector.shape_cast %13 : vector<8xf32> to vector<8x1xf32>
    %15 = vector.broadcast %14 : vector<8x1xf32> to vector<8x256xf32>
    %16 = arith.cmpf oeq, %11, %15 : vector<8x256xf32>
    %c256_i32 = arith.constant 256 : i32
    %17 = vector.broadcast %c256_i32 : i32 to vector<8x256xi32>
    %18 = arith.select %16, %12, %17 : vector<8x256xi1>, vector<8x256xi32>
    %cst_7 = arith.constant dense<2147483647> : vector<8xi32>
    %19 = vector.multi_reduction <minsi>, %18, %cst_7 [1] : vector<8x256xi32> to vector<8xi32>
    %20 = vector.shape_cast %19 : vector<8xi32> to vector<8x1xi32>
    %21 = vector.broadcast %20 : vector<8x1xi32> to vector<8x256xi32>
    %22 = arith.cmpi eq, %12, %21 : vector<8x256xi32>
    %cst_8 = arith.constant 0.000000e+00 : f32
    %23 = vector.broadcast %cst_8 : f32 to vector<8x256xf32>
    %24 = arith.select %22, %4, %23 : vector<8x256xi1>, vector<8x256xf32>
    %cst_9 = arith.constant dense<0.000000e+00> : vector<8xf32>
    %25 = vector.multi_reduction <add>, %24, %cst_9 [1] : vector<8x256xf32> to vector<8xf32>
    %26 = vector.shape_cast %25 : vector<8xf32> to vector<8x1xf32>
    %27 = arith.extui %22 : vector<8x256xi1> to vector<8x256xi32>
    %28 = arith.sitofp %27 : vector<8x256xi32> to vector<8x256xf32>
    %cst_10 = arith.constant dense<0.000000e+00> : vector<8x128xf32>
    %29 = tpu.matmul %28, %1, %cst_10 {dimension_numbers = #tpu.dot_dimension_numbers<[1], [0], [0], [1], [0, 0, 1, 1], [], []>} : vector<8x256xf32>, vector<256x128xf32>, vector<8x128xf32> -> vector<8x128xf32>
    %c0_11 = arith.constant 0 : index
    %c0_12 = arith.constant 0 : index
    %30 = vector.load %arg6[%c0_11, %c0_12] : memref<8x384xf32, #tpu.memory_space<vmem>>, vector<8x128xf32>
    tpu.vector_store %arg6[%c0_11, %c0_12], %29 {strides = array<i32>} : memref<8x384xf32, #tpu.memory_space<vmem>>, vector<8x128xf32>,
    %cst_13 = arith.constant 0xFF800000 : f32
    %31 = vector.broadcast %cst_13 : f32 to vector<8x256xf32>
    %32 = arith.select %22, %31, %11 : vector<8x256xi1>, vector<8x256xf32>
    %cst_14 = arith.constant dense<0xFF800000> : vector<8xf32>
    %33 = vector.multi_reduction <maximumf>, %32, %cst_14 [1] : vector<8x256xf32> to vector<8xf32>
    %34 = vector.shape_cast %33 : vector<8xf32> to vector<8x1xf32>
    %35 = vector.broadcast %34 : vector<8x1xf32> to vector<8x256xf32>
    %36 = arith.cmpf oeq, %32, %35 : vector<8x256xf32>
    %c256_i32_15 = arith.constant 256 : i32
    %37 = vector.broadcast %c256_i32_15 : i32 to vector<8x256xi32>
    %38 = arith.select %36, %12, %37 : vector<8x256xi1>, vector<8x256xi32>
    %cst_16 = arith.constant dense<2147483647> : vector<8xi32>
    %39 = vector.multi_reduction <minsi>, %38, %cst_16 [1] : vector<8x256xi32> to vector<8xi32>
    %40 = vector.shape_cast %39 : vector<8xi32> to vector<8x1xi32>
    %41 = vector.broadcast %40 : vector<8x1xi32> to vector<8x256xi32>
    %42 = arith.cmpi eq, %12, %41 : vector<8x256xi32>
    %cst_17 = arith.constant 0.000000e+00 : f32
    %43 = vector.broadcast %cst_17 : f32 to vector<8x256xf32>
    %44 = arith.select %42, %4, %43 : vector<8x256xi1>, vector<8x256xf32>
    %cst_18 = arith.constant dense<0.000000e+00> : vector<8xf32>
    %45 = vector.multi_reduction <add>, %44, %cst_18 [1] : vector<8x256xf32> to vector<8xf32>
    %46 = vector.shape_cast %45 : vector<8xf32> to vector<8x1xf32>
    %47 = arith.extui %42 : vector<8x256xi1> to vector<8x256xi32>
    %48 = arith.sitofp %47 : vector<8x256xi32> to vector<8x256xf32>
    %cst_19 = arith.constant dense<0.000000e+00> : vector<8x128xf32>
    %49 = tpu.matmul %48, %1, %cst_19 {dimension_numbers = #tpu.dot_dimension_numbers<[1], [0], [0], [1], [0, 0, 1, 1], [], []>} : vector<8x256xf32>, vector<256x128xf32>, vector<8x128xf32> -> vector<8x128xf32>
    %c0_20 = arith.constant 0 : index
    %c128 = arith.constant 128 : index
    %50 = vector.load %arg6[%c0_20, %c128] : memref<8x384xf32, #tpu.memory_space<vmem>>, vector<8x128xf32>
    tpu.vector_store %arg6[%c0_20, %c128], %49 {strides = array<i32>} : memref<8x384xf32, #tpu.memory_space<vmem>>, vector<8x128xf32>,
    %cst_21 = arith.constant 0xFF800000 : f32
    %51 = vector.broadcast %cst_21 : f32 to vector<8x256xf32>
    %52 = arith.select %42, %51, %32 : vector<8x256xi1>, vector<8x256xf32>
    %cst_22 = arith.constant dense<0xFF800000> : vector<8xf32>
    %53 = vector.multi_reduction <maximumf>, %52, %cst_22 [1] : vector<8x256xf32> to vector<8xf32>
    %54 = vector.shape_cast %53 : vector<8xf32> to vector<8x1xf32>
    %55 = vector.broadcast %54 : vector<8x1xf32> to vector<8x256xf32>
    %56 = arith.cmpf oeq, %52, %55 : vector<8x256xf32>
    %c256_i32_23 = arith.constant 256 : i32
    %57 = vector.broadcast %c256_i32_23 : i32 to vector<8x256xi32>
    %58 = arith.select %56, %12, %57 : vector<8x256xi1>, vector<8x256xi32>
    %cst_24 = arith.constant dense<2147483647> : vector<8xi32>
    %59 = vector.multi_reduction <minsi>, %58, %cst_24 [1] : vector<8x256xi32> to vector<8xi32>
    %60 = vector.shape_cast %59 : vector<8xi32> to vector<8x1xi32>
    %61 = vector.broadcast %60 : vector<8x1xi32> to vector<8x256xi32>
    %62 = arith.cmpi eq, %12, %61 : vector<8x256xi32>
    %cst_25 = arith.constant 0.000000e+00 : f32
    %63 = vector.broadcast %cst_25 : f32 to vector<8x256xf32>
    %64 = arith.select %62, %4, %63 : vector<8x256xi1>, vector<8x256xf32>
    %cst_26 = arith.constant dense<0.000000e+00> : vector<8xf32>
    %65 = vector.multi_reduction <add>, %64, %cst_26 [1] : vector<8x256xf32> to vector<8xf32>
    %66 = vector.shape_cast %65 : vector<8xf32> to vector<8x1xf32>
    %67 = arith.extui %62 : vector<8x256xi1> to vector<8x256xi32>
    %68 = arith.sitofp %67 : vector<8x256xi32> to vector<8x256xf32>
    %cst_27 = arith.constant dense<0.000000e+00> : vector<8x128xf32>
    %69 = tpu.matmul %68, %1, %cst_27 {dimension_numbers = #tpu.dot_dimension_numbers<[1], [0], [0], [1], [0, 0, 1, 1], [], []>} : vector<8x256xf32>, vector<256x128xf32>, vector<8x128xf32> -> vector<8x128xf32>
    %c0_28 = arith.constant 0 : index
    %c256 = arith.constant 256 : index
    %70 = vector.load %arg6[%c0_28, %c256] : memref<8x384xf32, #tpu.memory_space<vmem>>, vector<8x128xf32>
    tpu.vector_store %arg6[%c0_28, %c256], %69 {strides = array<i32>} : memref<8x384xf32, #tpu.memory_space<vmem>>, vector<8x128xf32>,
    %71 = tpu.concatenate %14, %34, %54 in 1 : vector<8x1xf32>, vector<8x1xf32>, vector<8x1xf32> -> vector<8x3xf32>
    %c0_29 = arith.constant 0 : index
    %c0_30 = arith.constant 0 : index
    %72 = vector.load %arg4[%c0_29, %c0_30] : memref<8x3xf32, #tpu.memory_space<vmem>>, vector<8x3xf32>
    tpu.vector_store %arg4[%c0_29, %c0_30], %71 {strides = array<i32>} : memref<8x3xf32, #tpu.memory_space<vmem>>, vector<8x3xf32>,
    %73 = tpu.concatenate %20, %40, %60 in 1 : vector<8x1xi32>, vector<8x1xi32>, vector<8x1xi32> -> vector<8x3xi32>
    %c0_31 = arith.constant 0 : index
    %c0_32 = arith.constant 0 : index
    %74 = vector.load %arg5[%c0_31, %c0_32] : memref<8x3xi32, #tpu.memory_space<vmem>>, vector<8x3xi32>
    tpu.vector_store %arg5[%c0_31, %c0_32], %73 {strides = array<i32>} : memref<8x3xi32, #tpu.memory_space<vmem>>, vector<8x3xi32>,
    %75 = tpu.concatenate %26, %46, %66 in 1 : vector<8x1xf32>, vector<8x1xf32>, vector<8x1xf32> -> vector<8x3xf32>
    %c0_33 = arith.constant 0 : index
    %c0_34 = arith.constant 0 : index
    %76 = vector.load %arg7[%c0_33, %c0_34] : memref<8x3xf32, #tpu.memory_space<vmem>>, vector<8x3xf32>
    tpu.vector_store %arg7[%c0_33, %c0_34], %75 {strides = array<i32>} : memref<8x3xf32, #tpu.memory_space<vmem>>, vector<8x3xf32>,
    return
  }
  func.func @transform_0(%arg0: i32) -> (i32, i32) {
    %c0_i32 = arith.constant 0 : i32
    %c0_i32_0 = arith.constant 0 : i32
    return %arg0, %c0_i32 : i32, i32
  }
  func.func @transform_1(%arg0: i32) -> (i32, i32) {
    %c0_i32 = arith.constant 0 : i32
    %c0_i32_0 = arith.constant 0 : i32
    %c0_i32_1 = arith.constant 0 : i32
    return %c0_i32, %c0_i32_0 : i32, i32
  }
  func.func @transform_2(%arg0: i32) -> (i32, i32) {
    %c0_i32 = arith.constant 0 : i32
    %c0_i32_0 = arith.constant 0 : i32
    %c0_i32_1 = arith.constant 0 : i32
    return %c0_i32, %c0_i32_0 : i32, i32
  }
  func.func @transform_3(%arg0: i32) -> (i32, i32) {
    %c0_i32 = arith.constant 0 : i32
    %c0_i32_0 = arith.constant 0 : i32
    return %arg0, %c0_i32 : i32, i32
  }
  func.func @transform_4(%arg0: i32) -> (i32, i32) {
    %c0_i32 = arith.constant 0 : i32
    %c0_i32_0 = arith.constant 0 : i32
    return %arg0, %c0_i32 : i32, i32
  }
  func.func @transform_5(%arg0: i32) -> (i32, i32) {
    %c0_i32 = arith.constant 0 : i32
    %c0_i32_0 = arith.constant 0 : i32
    return %arg0, %c0_i32 : i32, i32
  }
  func.func @transform_6(%arg0: i32) -> (i32, i32) {
    %c0_i32 = arith.constant 0 : i32
    %c0_i32_0 = arith.constant 0 : i32
    return %arg0, %c0_i32 : i32, i32
  }
}

</mosaic_0001>

<llo_original>
// kernel: tpu_custom_call.1
$region0: #{tpu_custom_call.1}
  #allocation0 [shape = 'u32[]', space=smem, size = 0x4, offset = 0x4, fixed_abs, tag = 'smem constant byte address 0x4 - core index']
  #allocation1 [shape = 'u32[72,128]{1,0:T(1,128)}', space=vmem, size = 0x9000, scoped, tag = 'internal scratch']
  %s0 = inlined_call_operand.hbm [shape: f32[16,128], index: 0, kind: input, shape index: {}]
  %s1 = inlined_call_operand.hbm [shape: f32[256,128], index: 1, kind: input, shape index: {}]
  %s2 = inlined_call_operand.hbm [shape: f32[1,256], index: 2, kind: input, shape index: {}]
  %s3 = inlined_call_operand.vmem [shape: f32[16,3], index: 3, kind: output, shape index: {0}]
  %s4 = inlined_call_operand.vmem [shape: s32[16,3], index: 4, kind: output, shape index: {1}]
  %s5 = inlined_call_operand.hbm [shape: f32[16,384], index: 5, kind: output, shape index: {2}]
  %s6 = inlined_call_operand.vmem [shape: f32[16,3], index: 6, kind: output, shape index: {3}]
  %7 = xla_tuple %s3, %s4, %s5, %s6
  %s8 = sld [smem:[#allocation0]]
  $region81: #{tpu_custom_call.1} parent=0
    _
  %s10 = ssub.s32 1, %s8
  %s11 = scalar_select 0, %s10, %s8
  $region1: #{tpu_custom_call.1} parent=0
    #allocation2 [shape = 'u8[8192]{0}', space=vmem, size = 0x2000, scoped, tag = 'input window, operand 0']
    #allocation3 [shape = 's32[2]{0}', space=sflag, size = 0x8, scoped, tag = 'scoped memory for tpu_custom_call.1']
    #allocation4 [shape = 's32[2]{0}', space=sflag, size = 0x8, scoped, tag = 'scoped memory for tpu_custom_call.1']
    #allocation5 [shape = 'u8[131072]{0}', space=vmem, size = 0x20000, scoped, tag = 'input window, operand 1, single buffered']
    #allocation6 [shape = 's32[1]{0}', space=sflag, size = 0x4, scoped, tag = 'scoped memory for tpu_custom_call.1']
    #allocation7 [shape = 'u8[1024]{0}', space=vmem, size = 0x400, scoped, tag = 'input window, operand 2, single buffered']
    #allocation8 [shape = 'u8[24576]{0}', space=vmem, size = 0x6000, scoped, tag = 'output window, operand 2']
    %12 = vsyncpa [#allocation3], 0
    %s13 = scalar_lea.sflag [#allocation3], 1
    %14 = vsyncpa %s13, 0
    %15 = vsyncpa [#allocation6], 0
    %16 = vsyncpa [#allocation4], 0
    %s17 = scalar_lea.sflag [#allocation4], 1
    %18 = vsyncpa %s17, 0
    loop: start=0, step=1, limit=4
    $region2: #{tpu_custom_call.1} parent=1 // loop_pre_header
      _
    $region3: #{tpu_custom_call.1} parent=1 // loop_header
      %s20 = sphi 0, %s24
      %p21 = scmp.ge.s32.totalorder %s20, 4
      %s30 = sphi 0, %s32
      %s33 = sphi 0, %s30
      %s34 = sphi 0, %s33
      %s50 = sphi 0, %s34
      %s54 = sphi 0, %s54
      %s56 = sphi 0, %s54
      %s57 = sphi 0, %s56
      %s71 = sphi 0, %s57
      %s75 = sphi 0, %s75
      %s77 = sphi 0, %s75
      %s78 = sphi 0, %s77
      %s92 = sphi 0, %s78
      %s98 = sphi 0, %s100
      %s101 = sphi 0, %s98
      %s102 = sphi 0, %s101
      %s118 = sphi 0, %s102
      %s124 = sphi 0, %s126
      %s127 = sphi 0, %s124
      %s128 = sphi 0, %s127
      %s144 = sphi 0, %s128
      %s150 = sphi 0, %s152
      %s153 = sphi 0, %s150
      %s154 = sphi 0, %s153
      %s170 = sphi 0, %s154
      %s176 = sphi 0, %s178
      %s179 = sphi 0, %s176
      %s180 = sphi 0, %s179
      %s196 = sphi 0, %s180
    $region4: #{tpu_custom_call.1} parent=1 // loop_header_branch
      %23 = sbr.rel (%p21) target = $region8
    $region5: #{tpu_custom_call.1} parent=1 // loop_body
      %s25 = ssub.s32 %s20, 1
      %s26 = ssub.s32 %s20, 2
      %s27 = sadd.s32 %s20, 1
      %s28 = ssub.s32 %s20, %s27
      %p29 = scmp.eq.s32.totalorder %s28, 0
      %s31 = sadd.s32 %s30, 1
      %s32 = scalar_select %p29, %s30, %s31
      %p35 = pneg %p29
      %p36 = scmp.eq.s32.totalorder %s20, 1
      %p37 = por %p35, %p36
      %p38 = scmp.ne.s32.totalorder %s30, %s33
      %p39 = scmp.eq.s32.totalorder %s20, 0
      %p40 = por %p38, %p39
      %p41 = scmp.ne.s32.totalorder %s30, %s33
      %p42 = scmp.eq.s32.totalorder %s25, 1
      %p43 = por %p41, %p42
      %p44 = scmp.ne.s32.totalorder %s33, %s34
      %p45 = scmp.eq.s32.totalorder %s25, 0
      %p46 = por %p44, %p45
      %p47 = scmp.ne.s32.totalorder %s33, %s34
      %p48 = scmp.eq.s32.totalorder %s26, 1
      %p49 = por %p47, %p48
      %p51 = scmp.ne.s32.totalorder %s34, %s50
      %p52 = scmp.eq.s32.totalorder %s26, 0
      %p53 = por %p51, %p52
      %s55 = sadd.s32 %s54, 1
      %p58 = scmp.eq.s32.totalorder %s20, 1
      %p59 = scmp.ne.s32.totalorder %s54, %s56
      %p60 = scmp.eq.s32.totalorder %s20, 0
      %p61 = por %p59, %p60
      %p62 = scmp.ne.s32.totalorder %s54, %s56
      %p63 = scmp.eq.s32.totalorder %s25, 1
      %p64 = por %p62, %p63
      %p65 = scmp.ne.s32.totalorder %s56, %s57
      %p66 = scmp.eq.s32.totalorder %s25, 0
      %p67 = por %p65, %p66
      %p68 = scmp.ne.s32.totalorder %s56, %s57
      %p69 = scmp.eq.s32.totalorder %s26, 1
      %p70 = por %p68, %p69
      %p72 = scmp.ne.s32.totalorder %s57, %s71
      %p73 = scmp.eq.s32.totalorder %s26, 0
      %p74 = por %p72, %p73
      %s76 = sadd.s32 %s75, 1
      %p79 = scmp.eq.s32.totalorder %s20, 1
      %p80 = scmp.ne.s32.totalorder %s75, %s77
      %p81 = scmp.eq.s32.totalorder %s20, 0
      %p82 = por %p80, %p81
      %p83 = scmp.ne.s32.totalorder %s75, %s77
      %p84 = scmp.eq.s32.totalorder %s25, 1
      %p85 = por %p83, %p84
      %p86 = scmp.ne.s32.totalorder %s77, %s78
      %p87 = scmp.eq.s32.totalorder %s25, 0
      %p88 = por %p86, %p87
      %p89 = scmp.ne.s32.totalorder %s77, %s78
      %p90 = scmp.eq.s32.totalorder %s26, 1
      %p91 = por %p89, %p90
      %p93 = scmp.ne.s32.totalorder %s78, %s92
      %p94 = scmp.eq.s32.totalorder %s26, 0
      %p95 = por %p93, %p94
      %s96 = ssub.s32 %s20, %s27
      %p97 = scmp.eq.s32.totalorder %s96, 0
      %s99 = sadd.s32 %s98, 1
      %s100 = scalar_select %p97, %s98, %s99
      %p103 = pneg %p97
      %p104 = scmp.eq.s32.totalorder %s20, 1
      %p105 = por %p103, %p104
      %p106 = scmp.ne.s32.totalorder %s98, %s101
      %p107 = scmp.eq.s32.totalorder %s20, 0
      %p108 = por %p106, %p107
      %p109 = scmp.ne.s32.totalorder %s98, %s101
      %p110 = scmp.eq.s32.totalorder %s25, 1
      %p111 = por %p109, %p110
      %p112 = scmp.ne.s32.totalorder %s101, %s102
      %p113 = scmp.eq.s32.totalorder %s25, 0
      %p114 = por %p112, %p113
      %p115 = scmp.ne.s32.totalorder %s101, %s102
      %p116 = scmp.eq.s32.totalorder %s26, 1
      %p117 = por %p115, %p116
      %p119 = scmp.ne.s32.totalorder %s102, %s118
      %p120 = scmp.eq.s32.totalorder %s26, 0
      %p121 = por %p119, %p120
      %s122 = ssub.s32 %s20, %s27
      %p123 = scmp.eq.s32.totalorder %s122, 0
      %s125 = sadd.s32 %s124, 1
      %s126 = scalar_select %p123, %s124, %s125
      %p129 = pneg %p123
      %p130 = scmp.eq.s32.totalorder %s20, 1
      %p131 = por %p129, %p130
      %p132 = scmp.ne.s32.totalorder %s124, %s127
      %p133 = scmp.eq.s32.totalorder %s20, 0
      %p134 = por %p132, %p133
      %p135 = scmp.ne.s32.totalorder %s124, %s127
      %p136 = scmp.eq.s32.totalorder %s25, 1
      %p137 = por %p135, %p136
      %p138 = scmp.ne.s32.totalorder %s127, %s128
      %p139 = scmp.eq.s32.totalorder %s25, 0
      %p140 = por %p138, %p139
      %p141 = scmp.ne.s32.totalorder %s127, %s128
      %p142 = scmp.eq.s32.totalorder %s26, 1
      %p143 = por %p141, %p142
      %p145 = scmp.ne.s32.totalorder %s128, %s144
      %p146 = scmp.eq.s32.totalorder %s26, 0
      %p147 = por %p145, %p146
      %s148 = ssub.s32 %s20, %s27
      %p149 = scmp.eq.s32.totalorder %s148, 0
      %s151 = sadd.s32 %s150, 1
      %s152 = scalar_select %p149, %s150, %s151
      %p155 = pneg %p149
      %p156 = scmp.eq.s32.totalorder %s20, 1
      %p157 = por %p155, %p156
      %p158 = scmp.ne.s32.totalorder %s150, %s153
      %p159 = scmp.eq.s32.totalorder %s20, 0
      %p160 = por %p158, %p159
      %p161 = scmp.ne.s32.totalorder %s150, %s153
      %p162 = scmp.eq.s32.totalorder %s25, 1
      %p163 = por %p161, %p162
      %p164 = scmp.ne.s32.totalorder %s153, %s154
      %p165 = scmp.eq.s32.totalorder %s25, 0
      %p166 = por %p164, %p165
      %p167 = scmp.ne.s32.totalorder %s153, %s154
      %p168 = scmp.eq.s32.totalorder %s26, 1
      %p169 = por %p167, %p168
      %p171 = scmp.ne.s32.totalorder %s154, %s170
      %p172 = scmp.eq.s32.totalorder %s26, 0
      %p173 = por %p171, %p172
      %s174 = ssub.s32 %s20, %s27
      %p175 = scmp.eq.s32.totalorder %s174, 0
      %s177 = sadd.s32 %s176, 1
      %s178 = scalar_select %p175, %s176, %s177
      %p181 = pneg %p175
      %p182 = scmp.eq.s32.totalorder %s20, 1
      %p183 = por %p181, %p182
      %p184 = scmp.ne.s32.totalorder %s176, %s179
      %p185 = scmp.eq.s32.totalorder %s20, 0
      %p186 = por %p184, %p185
      %p187 = scmp.ne.s32.totalorder %s176, %s179
      %p188 = scmp.eq.s32.totalorder %s25, 1
      %p189 = por %p187, %p188
      %p190 = scmp.ne.s32.totalorder %s179, %s180
      %p191 = scmp.eq.s32.totalorder %s25, 0
      %p192 = por %p190, %p191
      %p193 = scmp.ne.s32.totalorder %s179, %s180
      %p194 = scmp.eq.s32.totalorder %s26, 1
      %p195 = por %p193, %p194
      %p197 = scmp.ne.s32.totalorder %s180, %s196
      %p198 = scmp.eq.s32.totalorder %s26, 0
      %p199 = por %p197, %p198
      %p200 = scmp.le.s32.totalorder 1, %s20
      %p201 = scmp.lt.s32.totalorder %s20, 3
      %p202 = pnand %p200, %p201
      %p203 = pneg %p202
      // Predicated region
      $region9: #{tpu_custom_call.1} parent=5 // pred_check
        _
      $region10: #{tpu_custom_call.1} parent=5 // pred_check_branch
        %205 = sbr.rel (%p202) target = $region12
      $region11: #{tpu_custom_call.1} parent=5 // pred_region
        %s206 = ssub.s32 %s20, 1
        // Predicated region
        $region13: #{tpu_custom_call.1} parent=11 // pred_check
          %p207 = pneg %p67
        $region14: #{tpu_custom_call.1} parent=11 // pred_check_branch
          %209 = sbr.rel (%p207) target = $region16
        $region15: #{tpu_custom_call.1} parent=11 // pred_region
          %211 = vsyncadd [#allocation6], 0
          %s212 = sshll.u32 %s1, 4
          %s213 = int_to_ptr.hbm [resolvable:$true] %s212
          %s214 = sshll.u32 [#allocation5], 4
          %s215 = int_to_ptr.vmem [resolvable:$true] %s214
          %220 = dma.hbm_to_vmem [thread:$0]  %s213, 4096, %s215, [#allocation6], 128, 128, 8
        $region16: #{tpu_custom_call.1} parent=11 // pred_fallthru
          _
        // Predicated region
        $region17: #{tpu_custom_call.1} parent=11 // pred_check
          %p221 = pneg %p88
        $region18: #{tpu_custom_call.1} parent=11 // pred_check_branch
          %223 = sbr.rel (%p221) target = $region20
        $region19: #{tpu_custom_call.1} parent=11 // pred_region
          %225 = vsyncadd [#allocation6], 0
          %s227 = sshll.u32 %s2, 4
          %s228 = int_to_ptr.hbm [resolvable:$true] %s227
          %s229 = sshll.u32 [#allocation7], 4
          %s230 = int_to_ptr.vmem [resolvable:$true] %s229
          %232 = dma.hbm_to_vmem [thread:$0]  %s228, 32, %s230, [#allocation6]
        $region20: #{tpu_custom_call.1} parent=11 // pred_fallthru
          _
      $region12: #{tpu_custom_call.1} parent=5 // pred_fallthru
        _
      %p233 = scmp.lt.s32.totalorder %s20, 2
      // Predicated region
      $region21: #{tpu_custom_call.1} parent=5 // pred_check
        %p234 = pneg %p233
      $region22: #{tpu_custom_call.1} parent=5 // pred_check_branch
        %236 = sbr.rel (%p234) target = $region24
      $region23: #{tpu_custom_call.1} parent=5 // pred_region
        // Predicated region
        $region25: #{tpu_custom_call.1} parent=23 // pred_check
          %p237 = pneg %p40
        $region26: #{tpu_custom_call.1} parent=23 // pred_check_branch
          %239 = sbr.rel (%p237) target = $region28
        $region27: #{tpu_custom_call.1} parent=23 // pred_region
          %s240 = sand.u32 %s30, 1
          %s241 = scalar_lea.sflag [#allocation3], %s240
          %s242 = sand.u32 %s30, 1
          %s243 = smul.addr %s242, 8
          %s244 = scalar_lea.vmem [#allocation2], %s243
          %246 = vsyncadd %s241, 0
          %s247 = smul.addr %s20, 8
          %s248 = scalar_lea.hbm %s0, %s247
          %s250 = sshll.u32 %s248, 4
          %s251 = int_to_ptr.hbm [resolvable:$true] %s250
          %s252 = sshll.u32 %s244, 4
          %s253 = int_to_ptr.vmem [resolvable:$true] %s252
          %255 = dma.hbm_to_vmem [thread:$0]  %s251, 128, %s253, %s241
        $region28: #{tpu_custom_call.1} parent=23 // pred_fallthru
          _
      $region24: #{tpu_custom_call.1} parent=5 // pred_fallthru
        _
      %p256 = scmp.le.s32.totalorder 1, %s20
      %p257 = scmp.lt.s32.totalorder %s20, 3
      %p258 = pnand %p256, %p257
      %p259 = pneg %p258
      // Predicated region
      $region29: #{tpu_custom_call.1} parent=5 // pred_check
        _
      $region30: #{tpu_custom_call.1} parent=5 // pred_check_branch
        %261 = sbr.rel (%p258) target = $region32
      $region31: #{tpu_custom_call.1} parent=5 // pred_region
        %s262 = ssub.s32 %s20, 1
        %s263 = sand.u32 %s33, 1
        %s264 = scalar_lea.sflag [#allocation3], %s263
        %s265 = sand.u32 %s33, 1
        %s266 = smul.addr %s265, 8
        %s267 = scalar_lea.vmem [#allocation2], %s266
        // Predicated region
        $region33: #{tpu_custom_call.1} parent=31 // pred_check
          %p268 = pneg %p46
        $region34: #{tpu_custom_call.1} parent=31 // pred_check_branch
          %270 = sbr.rel (%p268) target = $region36
        $region35: #{tpu_custom_call.1} parent=31 // pred_region
          %272 = dma.done %s264, 128
        $region36: #{tpu_custom_call.1} parent=31 // pred_fallthru
          _
        // Predicated region
        $region37: #{tpu_custom_call.1} parent=31 // pred_check
          %p273 = pneg %p67
        $region38: #{tpu_custom_call.1} parent=31 // pred_check_branch
          %275 = sbr.rel (%p273) target = $region40
        $region39: #{tpu_custom_call.1} parent=31 // pred_region
          %277 = dma.done [#allocation6], 4096
        $region40: #{tpu_custom_call.1} parent=31 // pred_fallthru
          _
        // Predicated region
        $region41: #{tpu_custom_call.1} parent=31 // pred_check
          %p278 = pneg %p88
        $region42: #{tpu_custom_call.1} parent=31 // pred_check_branch
          %280 = sbr.rel (%p278) target = $region44
        $region43: #{tpu_custom_call.1} parent=31 // pred_region
          %282 = dma.done [#allocation6], 32
        $region44: #{tpu_custom_call.1} parent=31 // pred_fallthru
          _
        %s283 = sand.u32 %s33, 1
        %s284 = scalar_lea.sflag [#allocation3], %s283
        %s285 = sand.u32 %s33, 1
        %s286 = smul.addr %s285, 8
        %s287 = scalar_lea.vmem [#allocation2], %s286
        %p288 = pneg %p46
        %p289 = pneg %p43
        %p290 = pneg %p67
        %p291 = pneg %p64
        %p292 = pneg %p88
        %p293 = pneg %p85
        %p294 = pneg %p114
        %p295 = pneg %p111
        %p296 = scmp.lt.s32.totalorder %s25, 1
        %s297 = scalar_select %p296, %s25, 1
        %s298 = smul.addr %s297, 8
        %s299 = scalar_lea.vmem %s3, %s298
        %p300 = pneg %p140
        %p301 = pneg %p137
        %p302 = scmp.lt.s32.totalorder %s25, 1
        %s303 = scalar_select %p302, %s25, 1
        %s304 = smul.addr %s303, 8
        %s305 = scalar_lea.vmem %s4, %s304
        %p306 = pneg %p166
        %p307 = pneg %p163
        %s308 = sand.u32 %s153, 1
        %s309 = scalar_lea.sflag [#allocation4], %s308
        %s310 = sand.u32 %s153, 1
        %s311 = smul.addr %s310, 24
        %s312 = scalar_lea.vmem [#allocation8], %s311
        %p313 = pneg %p192
        %p314 = pneg %p189
        %p315 = scmp.lt.s32.totalorder %s25, 1
        %s316 = scalar_select %p315, %s25, 1
        %s317 = smul.addr %s316, 8
        %s318 = scalar_lea.vmem %s6, %s317
        %p319 = scmp.lt.s32.totalorder %s25, 1
        %s320 = scalar_select %p319, %s25, 1
        %s321 = smul.addr %s320, 8
        %s322 = scalar_lea.vmem %s3, %s321
        %p323 = scmp.lt.s32.totalorder %s25, 1
        %s324 = scalar_select %p323, %s25, 1
        %s325 = smul.addr %s324, 8
        %s326 = scalar_lea.vmem %s4, %s325
        %p327 = scmp.lt.s32.totalorder %s25, 1
        %s328 = scalar_select %p327, %s25, 1
        %s329 = smul.addr %s328, 8
        %s330 = scalar_lea.vmem %s6, %s329
        %v331 = vld [vmem:[%s267] sm:$0xff]
        %v332 = vld [vmem:[#allocation5] sm:$0xff]
        %v333 = vld [vmem:[#allocation5 + $0x8] sm:$0xff]
        %v334 = vld [vmem:[#allocation5 + $0x10] sm:$0xff]
        %v335 = vld [vmem:[#allocation5 + $0x18] sm:$0xff]
        %v336 = vld [vmem:[#allocation5 + $0x20] sm:$0xff]
        %v337 = vld [vmem:[#allocation5 + $0x28] sm:$0xff]
        %v338 = vld [vmem:[#allocation5 + $0x30] sm:$0xff]
        %v339 = vld [vmem:[#allocation5 + $0x38] sm:$0xff]
        %v340 = vld [vmem:[#allocation5 + $0x40] sm:$0xff]
        %v341 = vld [vmem:[#allocation5 + $0x48] sm:$0xff]
        %v342 = vld [vmem:[#allocation5 + $0x50] sm:$0xff]
        %v343 = vld [vmem:[#allocation5 + $0x58] sm:$0xff]
        %v344 = vld [vmem:[#allocation5 + $0x60] sm:$0xff]
        %v345 = vld [vmem:[#allocation5 + $0x68] sm:$0xff]
        %v346 = vld [vmem:[#allocation5 + $0x70] sm:$0xff]
        %v347 = vld [vmem:[#allocation5 + $0x78] sm:$0xff]
        %v348 = vld [vmem:[#allocation5 + $0x80] sm:$0xff]
        %v349 = vld [vmem:[#allocation5 + $0x88] sm:$0xff]
        %v350 = vld [vmem:[#allocation5 + $0x90] sm:$0xff]
        %v351 = vld [vmem:[#allocation5 + $0x98] sm:$0xff]
        %v352 = vld [vmem:[#allocation5 + $0xa0] sm:$0xff]
        %v353 = vld [vmem:[#allocation5 + $0xa8] sm:$0xff]
        %v354 = vld [vmem:[#allocation5 + $0xb0] sm:$0xff]
        %v355 = vld [vmem:[#allocation5 + $0xb8] sm:$0xff]
        %v356 = vld [vmem:[#allocation5 + $0xc0] sm:$0xff]
        %v357 = vld [vmem:[#allocation5 + $0xc8] sm:$0xff]
        %v358 = vld [vmem:[#allocation5 + $0xd0] sm:$0xff]
        %v359 = vld [vmem:[#allocation5 + $0xd8] sm:$0xff]
        %v360 = vld [vmem:[#allocation5 + $0xe0] sm:$0xff]
        %v361 = vld [vmem:[#allocation5 + $0xe8] sm:$0xff]
        %v362 = vld [vmem:[#allocation5 + $0xf0] sm:$0xff]
        %v363 = vld [vmem:[#allocation5 + $0xf8] sm:$0xff]
        %v364 = vld [vmem:[#allocation7] sm:$0x3]
        %v366 = vperm.slane %v364, 0
        %v367 = vperm.slane %v364, 1
        %v370 = vmul.f32 %v331, %v331
        %371 = vadd.xlane.f32.xlu0 %v370
        %v372 = vpop.xlane.xlu0 %371
        %v373 = vrsqrt.pop %v372
        %v374 = vmul.f32 %v373, %v372
        %v375 = vmul.f32 %v374, %v373
        %v376 = vmul.f32 0.5, %v375
        %v377 = vsub.f32 1.5, %v376
        %v378 = vmul.f32 %v373, %v377
        %vm379 = vweird.f32 %v372
        %vm380 = vweird.f32 %v373
        %vm381 = vmor %vm379, %vm380
        %v382 = vsel %vm381, %v373, %v378
        %v383 = vmul.f32 %v331, %v382
        %384 = vmatpush.xpose.msra.mxu0 %v347
        %385 = vmatpush.xpose.msra.mxu0 %v346
        %386 = vmatpush.xpose.msra.mxu0 %v345
        %387 = vmatpush.xpose.msra.mxu0 %v344
        %388 = vmatpush.xpose.msra.mxu0 %v343
        %389 = vmatpush.xpose.msra.mxu0 %v342
        %390 = vmatpush.xpose.msra.mxu0 %v341
        %391 = vmatpush.xpose.msra.mxu0 %v340
        %392 = vmatpush.xpose.msra.mxu0 %v339
        %393 = vmatpush.xpose.msra.mxu0 %v338
        %394 = vmatpush.xpose.msra.mxu0 %v337
        %395 = vmatpush.xpose.msra.mxu0 %v336
        %396 = vmatpush.xpose.msra.mxu0 %v335
        %397 = vmatpush.xpose.msra.mxu0 %v334
        %398 = vmatpush.xpose.msra.mxu0 %v333
        %399 = vmatpush.xpose.msra.mxu0 %v332
        %400 = vmatmul.f32.gmra.mxu0 %v383
        %v401 = vpop.f32.mrf.mxu0
        %v402 = vadd.f32 0.0, %v401
        %403 = vdwg.mxu0
        %404 = vmatpush.xpose.msra.mxu0 %v363
        %405 = vmatpush.xpose.msra.mxu0 %v362
        %406 = vmatpush.xpose.msra.mxu0 %v361
        %407 = vmatpush.xpose.msra.mxu0 %v360
        %408 = vmatpush.xpose.msra.mxu0 %v359
        %409 = vmatpush.xpose.msra.mxu0 %v358
        %410 = vmatpush.xpose.msra.mxu0 %v357
        %411 = vmatpush.xpose.msra.mxu0 %v356
        %412 = vmatpush.xpose.msra.mxu0 %v355
        %413 = vmatpush.xpose.msra.mxu0 %v354
        %414 = vmatpush.xpose.msra.mxu0 %v353
        %415 = vmatpush.xpose.msra.mxu0 %v352
        %416 = vmatpush.xpose.msra.mxu0 %v351
        %417 = vmatpush.xpose.msra.mxu0 %v350
        %418 = vmatpush.xpose.msra.mxu0 %v349
        %419 = vmatpush.xpose.msra.mxu0 %v348
        %420 = vmatmul.f32.gmra.mxu0 %v383
        %v421 = vpop.f32.mrf.mxu0
        %v422 = vadd.f32 0.0, %v421
        %423 = vdwg.mxu0
        %v424 = vlaneseq
        %v425 = vand.u32 %v424, 127
        %v426 = vadd.s32 %v425, 128
        %v427 = vmax.f32 %v402, %v422
        %428 = vmax.xlane.f32.xlu0 %v427
        %v429 = vpop.xlane.xlu0 %428
        %vm430 = vcmp.eq.f32.partialorder %v402, %v429
        %vm431 = vcmp.eq.f32.partialorder %v422, %v429
        %v432 = vsel %vm430, %v425, 256
        %v433 = vsel %vm431, %v426, 256
        %vm434 = vcmp.lt.s32.totalorder %v432, %v433
        %v435 = vsel %vm434, %v432, %v433
        %v436 = vand.u32 %v435, 65535
        %v437 = vshra.s32 %v435, 16
        %v438 = vcvt.s32.f32 %v436
        %v439 = vcvt.s32.f32 %v437
        %440 = vmin.xlane.f32.xlu0 %v439
        %v441 = vpop.xlane.xlu0 %440
        %vm442 = vcmp.eq.f32.partialorder %v439, %v441
        %v443 = vsel %vm442, %v438, inf
        %444 = vmin.xlane.f32.xlu0 %v443
        %v445 = vpop.xlane.xlu0 %444
        %v446 = vcvt.f32.s32 %v445
        %v447 = vcvt.f32.s32 %v441
        %v448 = vshll.u32 %v447, 16
        %v449 = vadd.s32 %v448, %v446
        %vm450 = vcmp.eq.s32.totalorder %v425, %v449
        %vm451 = vcmp.eq.s32.totalorder %v426, %v449
        %v452 = vsel %vm450, %v366, 0.0
        %v453 = vsel %vm451, %v367, 0.0
        %v454 = vadd.f32 %v452, %v453
        %455 = vadd.xlane.f32.xlu0 %v454
        %v456 = vpop.xlane.xlu0 %455
        %v457 = vsel %vm450, 1, 0
        %v458 = vsel %vm451, 1, 0
        %v459 = vcvt.s32.f32 %v457
        %v460 = vcvt.s32.f32 %v458
        %461 = vmatpush.msra.mxu0 %v347
        %462 = vmatpush.msra.mxu0 %v346
        %463 = vmatpush.msra.mxu0 %v345
        %464 = vmatpush.msra.mxu0 %v344
        %465 = vmatpush.msra.mxu0 %v343
        %466 = vmatpush.msra.mxu0 %v342
        %467 = vmatpush.msra.mxu0 %v341
        %468 = vmatpush.msra.mxu0 %v340
        %469 = vmatpush.msra.mxu0 %v339
        %470 = vmatpush.msra.mxu0 %v338
        %471 = vmatpush.msra.mxu0 %v337
        %472 = vmatpush.msra.mxu0 %v336
        %473 = vmatpush.msra.mxu0 %v335
        %474 = vmatpush.msra.mxu0 %v334
        %475 = vmatpush.msra.mxu0 %v333
        %476 = vmatpush.msra.mxu0 %v332
        %477 = vmatmul.f32.gmra.mxu0 %v459
        %v478 = vpop.f32.mrf.mxu0
        %v479 = vadd.f32 0.0, %v478
        %480 = vdwg.mxu0
        %481 = vmatpush.msra.mxu0 %v363
        %482 = vmatpush.msra.mxu0 %v362
        %483 = vmatpush.msra.mxu0 %v361
        %484 = vmatpush.msra.mxu0 %v360
        %485 = vmatpush.msra.mxu0 %v359
        %486 = vmatpush.msra.mxu0 %v358
        %487 = vmatpush.msra.mxu0 %v357
        %488 = vmatpush.msra.mxu0 %v356
        %489 = vmatpush.msra.mxu0 %v355
        %490 = vmatpush.msra.mxu0 %v354
        %491 = vmatpush.msra.mxu0 %v353
        %492 = vmatpush.msra.mxu0 %v352
        %493 = vmatpush.msra.mxu0 %v351
        %494 = vmatpush.msra.mxu0 %v350
        %495 = vmatpush.msra.mxu0 %v349
        %496 = vmatpush.msra.mxu0 %v348
        %497 = vmatmul.f32.gmra.mxu0 %v460
        %v498 = vpop.f32.mrf.mxu0
        %v499 = vadd.f32 %v479, %v498
        %500 = vdwg.mxu0
        %501 = vst [vmem:[%s312] sm:$0xff] %v499
        %v502 = vsel %vm450, -inf, %v402
        %v503 = vsel %vm451, -inf, %v422
        %v504 = vmax.f32 %v502, %v503
        %505 = vmax.xlane.f32.xlu0 %v504
        %v506 = vpop.xlane.xlu0 %505
        %vm507 = vcmp.eq.f32.partialorder %v502, %v506
        %vm508 = vcmp.eq.f32.partialorder %v503, %v506
        %v509 = vsel %vm507, %v425, 256
        %v510 = vsel %vm508, %v426, 256
        %vm511 = vcmp.lt.s32.totalorder %v509, %v510
        %v512 = vsel %vm511, %v509, %v510
        %v513 = vand.u32 %v512, 65535
        %v514 = vshra.s32 %v512, 16
        %v515 = vcvt.s32.f32 %v513
        %v516 = vcvt.s32.f32 %v514
        %517 = vmin.xlane.f32.xlu0 %v516
        %v518 = vpop.xlane.xlu0 %517
        %vm519 = vcmp.eq.f32.partialorder %v516, %v518
        %v520 = vsel %vm519, %v515, inf
        %521 = vmin.xlane.f32.xlu0 %v520
        %v522 = vpop.xlane.xlu0 %521
        %v523 = vcvt.f32.s32 %v522
        %v524 = vcvt.f32.s32 %v518
        %v525 = vshll.u32 %v524, 16
        %v526 = vadd.s32 %v525, %v523
        %vm527 = vcmp.eq.s32.totalorder %v425, %v526
        %vm528 = vcmp.eq.s32.totalorder %v426, %v526
        %v529 = vsel %vm527, %v366, 0.0
        %v530 = vsel %vm528, %v367, 0.0
        %v531 = vadd.f32 %v529, %v530
        %532 = vadd.xlane.f32.xlu0 %v531
        %v533 = vpop.xlane.xlu0 %532
        %v534 = vsel %vm527, 1, 0
        %v535 = vsel %vm528, 1, 0
        %v536 = vcvt.s32.f32 %v534
        %v537 = vcvt.s32.f32 %v535
        %538 = vmatpush.msra.mxu0 %v347
        %539 = vmatpush.msra.mxu0 %v346
        %540 = vmatpush.msra.mxu0 %v345
        %541 = vmatpush.msra.mxu0 %v344
        %542 = vmatpush.msra.mxu0 %v343
        %543 = vmatpush.msra.mxu0 %v342
        %544 = vmatpush.msra.mxu0 %v341
        %545 = vmatpush.msra.mxu0 %v340
        %546 = vmatpush.msra.mxu0 %v339
        %547 = vmatpush.msra.mxu0 %v338
        %548 = vmatpush.msra.mxu0 %v337
        %549 = vmatpush.msra.mxu0 %v336
        %550 = vmatpush.msra.mxu0 %v335
        %551 = vmatpush.msra.mxu0 %v334
        %552 = vmatpush.msra.mxu0 %v333
        %553 = vmatpush.msra.mxu0 %v332
        %554 = vmatmul.f32.gmra.mxu0 %v536
        %v555 = vpop.f32.mrf.mxu0
        %v556 = vadd.f32 0.0, %v555
        %557 = vdwg.mxu0
        %558 = vmatpush.msra.mxu0 %v363
        %559 = vmatpush.msra.mxu0 %v362
        %560 = vmatpush.msra.mxu0 %v361
        %561 = vmatpush.msra.mxu0 %v360
        %562 = vmatpush.msra.mxu0 %v359
        %563 = vmatpush.msra.mxu0 %v358
        %564 = vmatpush.msra.mxu0 %v357
        %565 = vmatpush.msra.mxu0 %v356
        %566 = vmatpush.msra.mxu0 %v355
        %567 = vmatpush.msra.mxu0 %v354
        %568 = vmatpush.msra.mxu0 %v353
        %569 = vmatpush.msra.mxu0 %v352
        %570 = vmatpush.msra.mxu0 %v351
        %571 = vmatpush.msra.mxu0 %v350
        %572 = vmatpush.msra.mxu0 %v349
        %573 = vmatpush.msra.mxu0 %v348
        %574 = vmatmul.f32.gmra.mxu0 %v537
        %v575 = vpop.f32.mrf.mxu0
        %v576 = vadd.f32 %v556, %v575
        %577 = vdwg.mxu0
        %578 = vst [vmem:[%s312 + $0x8] sm:$0xff] %v576
        %v579 = vsel %vm527, -inf, %v502
        %v580 = vsel %vm528, -inf, %v503
        %v581 = vmax.f32 %v579, %v580
        %582 = vmax.xlane.f32.xlu0 %v581
        %v583 = vpop.xlane.xlu0 %582
        %vm584 = vcmp.eq.f32.partialorder %v579, %v583
        %vm585 = vcmp.eq.f32.partialorder %v580, %v583
        %v586 = vsel %vm584, %v425, 256
        %v587 = vsel %vm585, %v426, 256
        %vm588 = vcmp.lt.s32.totalorder %v586, %v587
        %v589 = vsel %vm588, %v586, %v587
        %v590 = vand.u32 %v589, 65535
        %v591 = vshra.s32 %v589, 16
        %v592 = vcvt.s32.f32 %v590
        %v593 = vcvt.s32.f32 %v591
        %594 = vmin.xlane.f32.xlu0 %v593
        %v595 = vpop.xlane.xlu0 %594
        %vm596 = vcmp.eq.f32.partialorder %v593, %v595
        %v597 = vsel %vm596, %v592, inf
        %598 = vmin.xlane.f32.xlu0 %v597
        %v599 = vpop.xlane.xlu0 %598
        %v600 = vcvt.f32.s32 %v599
        %v601 = vcvt.f32.s32 %v595
        %v602 = vshll.u32 %v601, 16
        %v603 = vadd.s32 %v602, %v600
        %vm604 = vcmp.eq.s32.totalorder %v425, %v603
        %vm605 = vcmp.eq.s32.totalorder %v426, %v603
        %v606 = vsel %vm604, %v366, 0.0
        %v607 = vsel %vm605, %v367, 0.0
        %v608 = vadd.f32 %v606, %v607
        %609 = vadd.xlane.f32.xlu0 %v608
        %v610 = vpop.xlane.xlu0 %609
        %v611 = vsel %vm604, 1, 0
        %v612 = vsel %vm605, 1, 0
        %v613 = vcvt.s32.f32 %v611
        %v614 = vcvt.s32.f32 %v612
        %615 = vmatpush.msra.mxu0 %v347
        %616 = vmatpush.msra.mxu0 %v346
        %617 = vmatpush.msra.mxu0 %v345
        %618 = vmatpush.msra.mxu0 %v344
        %619 = vmatpush.msra.mxu0 %v343
        %620 = vmatpush.msra.mxu0 %v342
        %621 = vmatpush.msra.mxu0 %v341
        %622 = vmatpush.msra.mxu0 %v340
        %623 = vmatpush.msra.mxu0 %v339
        %624 = vmatpush.msra.mxu0 %v338
        %625 = vmatpush.msra.mxu0 %v337
        %626 = vmatpush.msra.mxu0 %v336
        %627 = vmatpush.msra.mxu0 %v335
        %628 = vmatpush.msra.mxu0 %v334
        %629 = vmatpush.msra.mxu0 %v333
        %630 = vmatpush.msra.mxu0 %v332
        %631 = vmatmul.f32.gmra.mxu0 %v613
        %v632 = vpop.f32.mrf.mxu0
        %v633 = vadd.f32 0.0, %v632
        %634 = vdwg.mxu0
        %635 = vmatpush.msra.mxu0 %v363
        %636 = vmatpush.msra.mxu0 %v362
        %637 = vmatpush.msra.mxu0 %v361
        %638 = vmatpush.msra.mxu0 %v360
        %639 = vmatpush.msra.mxu0 %v359
        %640 = vmatpush.msra.mxu0 %v358
        %641 = vmatpush.msra.mxu0 %v357
        %642 = vmatpush.msra.mxu0 %v356
        %643 = vmatpush.msra.mxu0 %v355
        %644 = vmatpush.msra.mxu0 %v354
        %645 = vmatpush.msra.mxu0 %v353
        %646 = vmatpush.msra.mxu0 %v352
        %647 = vmatpush.msra.mxu0 %v351
        %648 = vmatpush.msra.mxu0 %v350
        %649 = vmatpush.msra.mxu0 %v349
        %650 = vmatpush.msra.mxu0 %v348
        %651 = vmatmul.f32.gmra.mxu0 %v614
        %v652 = vpop.f32.mrf.mxu0
        %v653 = vadd.f32 %v633, %v652
        %654 = vdwg.mxu0
        %655 = vst [vmem:[%s312 + $0x10] sm:$0xff] %v653
        %vm656 = vcmask 7168
        %v657 = vsel %vm656, %v429, %v506
        %vm658 = vcmask 15360
        %v659 = vsel %vm658, %v657, %v583
        %vm660 = vcmask 23552
        %661 = vst.msk [vmem:[%s322] sm:$0xff] %vm660, %v659
        %v662 = vsel %vm656, %v449, %v526
        %v663 = vsel %vm658, %v662, %v603
        %664 = vst.msk [vmem:[%s326] sm:$0xff] %vm660, %v663
        %v665 = vsel %vm656, %v456, %v533
        %v666 = vsel %vm658, %v665, %v610
        %667 = vst.msk [vmem:[%s330] sm:$0xff] %vm660, %v666
        %p668 = scmp.lt.s32.totalorder %s25, 1
        %s669 = scalar_select %p668, %s25, 1
        %s670 = smul.addr %s669, 8
        %s671 = scalar_lea.vmem %s3, %s670
        %p672 = scmp.lt.s32.totalorder %s25, 1
        %s673 = scalar_select %p672, %s25, 1
        %s674 = smul.addr %s673, 8
        %s675 = scalar_lea.vmem %s4, %s674
        %s676 = sand.u32 %s153, 1
        %s677 = scalar_lea.sflag [#allocation4], %s676
        %s678 = sand.u32 %s153, 1
        %s679 = smul.addr %s678, 24
        %s680 = scalar_lea.vmem [#allocation8], %s679
        %p681 = scmp.lt.s32.totalorder %s25, 1
        %s682 = scalar_select %p681, %s25, 1
        %s683 = smul.addr %s682, 8
        %s684 = scalar_lea.vmem %s6, %s683
        // Predicated region
        $region45: #{tpu_custom_call.1} parent=31 // pred_check
          %p685 = pneg %p111
        $region46: #{tpu_custom_call.1} parent=31 // pred_check_branch
          %687 = sbr.rel (%p685) target = $region48
        $region47: #{tpu_custom_call.1} parent=31 // pred_region
          _
        $region48: #{tpu_custom_call.1} parent=31 // pred_fallthru
          _
        // Predicated region
        $region49: #{tpu_custom_call.1} parent=31 // pred_check
          %p688 = pneg %p137
        $region50: #{tpu_custom_call.1} parent=31 // pred_check_branch
          %690 = sbr.rel (%p688) target = $region52
        $region51: #{tpu_custom_call.1} parent=31 // pred_region
          _
        $region52: #{tpu_custom_call.1} parent=31 // pred_fallthru
          _
        // Predicated region
        $region53: #{tpu_custom_call.1} parent=31 // pred_check
          %p691 = pneg %p163
        $region54: #{tpu_custom_call.1} parent=31 // pred_check_branch
          %693 = sbr.rel (%p691) target = $region56
        $region55: #{tpu_custom_call.1} parent=31 // pred_region
          %695 = vsyncadd %s677, 0
          %s696 = smul.addr %s25, 3
          %s697 = smul.addr %s696, 8
          %s698 = scalar_lea.hbm %s5, %s697
          %s700 = sshll.u32 %s680, 4
          %s701 = int_to_ptr.vmem [resolvable:$true] %s700
          %s702 = sshll.u32 %s698, 4
          %s703 = int_to_ptr.hbm [resolvable:$true] %s702
          %705 = dma.vmem_to_hbm [thread:$0]  %s701, 384, %s703, %s677
        $region56: #{tpu_custom_call.1} parent=31 // pred_fallthru
          _
        // Predicated region
        $region57: #{tpu_custom_call.1} parent=31 // pred_check
          %p706 = pneg %p189
        $region58: #{tpu_custom_call.1} parent=31 // pred_check_branch
          %708 = sbr.rel (%p706) target = $region60
        $region59: #{tpu_custom_call.1} parent=31 // pred_region
          _
        $region60: #{tpu_custom_call.1} parent=31 // pred_fallthru
          _
      $region32: #{tpu_custom_call.1} parent=5 // pred_fallthru
        _
      %p709 = scmp.le.s32.totalorder 2, %s20
      // Predicated region
      $region61: #{tpu_custom_call.1} parent=5 // pred_check
        %p710 = pneg %p709
      $region62: #{tpu_custom_call.1} parent=5 // pred_check_branch
        %712 = sbr.rel (%p710) target = $region64
      $region63: #{tpu_custom_call.1} parent=5 // pred_region
        %s713 = ssub.s32 %s20, 2
        // Predicated region
        $region65: #{tpu_custom_call.1} parent=63 // pred_check
          %p714 = pneg %p117
        $region66: #{tpu_custom_call.1} parent=63 // pred_check_branch
          %716 = sbr.rel (%p714) target = $region68
        $region67: #{tpu_custom_call.1} parent=63 // pred_region
          %p717 = scmp.lt.s32.totalorder %s26, 1
          %s718 = scalar_select %p717, %s26, 1
          %s719 = smul.addr %s718, 8
          %s720 = scalar_lea.vmem %s3, %s719
        $region68: #{tpu_custom_call.1} parent=63 // pred_fallthru
          _
        // Predicated region
        $region69: #{tpu_custom_call.1} parent=63 // pred_check
          %p721 = pneg %p143
        $region70: #{tpu_custom_call.1} parent=63 // pred_check_branch
          %723 = sbr.rel (%p721) target = $region72
        $region71: #{tpu_custom_call.1} parent=63 // pred_region
          %p724 = scmp.lt.s32.totalorder %s26, 1
          %s725 = scalar_select %p724, %s26, 1
          %s726 = smul.addr %s725, 8
          %s727 = scalar_lea.vmem %s4, %s726
        $region72: #{tpu_custom_call.1} parent=63 // pred_fallthru
          _
        // Predicated region
        $region73: #{tpu_custom_call.1} parent=63 // pred_check
          %p728 = pneg %p169
        $region74: #{tpu_custom_call.1} parent=63 // pred_check_branch
          %730 = sbr.rel (%p728) target = $region76
        $region75: #{tpu_custom_call.1} parent=63 // pred_region
          %s731 = sand.u32 %s154, 1
          %s732 = scalar_lea.sflag [#allocation4], %s731
          %s733 = sand.u32 %s154, 1
          %s734 = smul.addr %s733, 24
          %s735 = scalar_lea.vmem [#allocation8], %s734
          %737 = dma.done %s732, 384
        $region76: #{tpu_custom_call.1} parent=63 // pred_fallthru
          _
        // Predicated region
        $region77: #{tpu_custom_call.1} parent=63 // pred_check
          %p738 = pneg %p195
        $region78: #{tpu_custom_call.1} parent=63 // pred_check_branch
          %740 = sbr.rel (%p738) target = $region80
        $region79: #{tpu_custom_call.1} parent=63 // pred_region
          %p741 = scmp.lt.s32.totalorder %s26, 1
          %s742 = scalar_select %p741, %s26, 1
          %s743 = smul.addr %s742, 8
          %s744 = scalar_lea.vmem %s6, %s743
        $region80: #{tpu_custom_call.1} parent=63 // pred_fallthru
          _
      $region64: #{tpu_custom_call.1} parent=5 // pred_fallthru
        _
    $region6: #{tpu_custom_call.1} parent=1 // loop_footer
      %s24 = sadd.s32 1, %s20
    $region7: #{tpu_custom_call.1} parent=1 // loop_footer_branch
      %19 = sbr.rel target = $region3
    $region8: #{tpu_custom_call.1} parent=1 // loop_exit
      _
    %745 = vsyncpa [#allocation3], 1
    %s746 = scalar_lea.sflag [#allocation3], 1
    %747 = vsyncpa %s746, 1
    %748 = vsyncpa [#allocation6], 1
    %749 = vsyncpa [#allocation4], 1
    %s750 = scalar_lea.sflag [#allocation4], 1
    %751 = vsyncpa %s750, 1

</llo_original>
